<compile_context>
chip_gen: v7x
topology: tpu7x:2x2x1
jax: 0.10.0
libtpu: 0.0.40
codegen_flags: <defaults>
</compile_context>

<pallas_src>
import functools

import numpy as np
import jax
import jax.numpy as jnp
from jax import lax
from jax.experimental import pallas as pl
from jax.experimental.pallas import tpu as pltpu


def _cdiv(a, b):
    return -(-a // b)


def _grid_pe_kernel(xgate_ref, ybase_ref, o_ref, *, tile_w, W):
    """Write one (1, tile_w, H*C) lane-dense output tile.

    out[0, w, h*C + c] = x_lin[w0 + w]  if c is even   (xgate == 1, ybase == 0)
                         y_lin[h]       if c is odd    (xgate == 0, ybase == y_lin[h])
    """
    # torch.linspace(-1, 1, N)[i] == -1 + 2*i/(N-1); steps == 1 -> [-1].
    w_scale = 2.0 / max(W - 1, 1)

    # x-embedding column for this W-tile: (1, tile_w, 1), depends only on w.
    w0 = pl.program_id(1) * tile_w
    w_idx = lax.broadcasted_iota(jnp.int32, (1, tile_w, 1), 1) + w0
    x_col = w_idx.astype(jnp.float32) * w_scale - 1.0

    # One broadcast multiply-add per output vreg; the store is the only heavy slot.
    o_ref[...] = x_col * xgate_ref[...] + ybase_ref[...]


def _vmem_budgets():
    """(per-block byte target, scoped-VMEM ceiling), generation aware.

    v5e/v6e have 128 MiB VMEM -> 16 MiB output blocks are cheap (fewer grid
    steps, no ragged tiles).  v7x has only 64 MiB physical / 32 MiB scoped
    default -> cap blocks at ~8 MiB so 2x block + headroom stays in budget.
    """
    try:
        vmem_cap = int(pltpu.get_tpu_info().vmem_capacity_bytes)
    except Exception:
        vmem_cap = 64 << 20  # conservative fallback (assume v7x-sized VMEM)
    if vmem_cap >= (100 << 20):
        return 16 << 20, 40 << 20
    return 8 << 20, 28 << 20


def _choose_tile_w(B, W, HC, target_block_bytes, itemsize=4, min_total_blocks=4):
    """Pick the W-tile width.

    Legal tiles: multiples of 8, or the full W (keeps the (8, 128) block rule
    with the full H*C lane dim).  Preference order among tiles that fit the
    per-block byte target:
      1) at least `min_total_blocks` grid steps (pipeline overlap: VMEM fill of
         tile i hides under tile i-1's HBM writeback),
      2) an even total block count (both v7x TensorCores get equal work),
      3) tile_w divides W exactly (no ragged masked last tile),
      4) largest tile_w (fewest ~0.35us grid-step overheads).
    """
    row_bytes = HC * itemsize
    cands = sorted({W} | set(range(8, W + 1, 8)))
    fitting = [tw for tw in cands if tw * row_bytes <= target_block_bytes]
    if not fitting:
        # Forced minimum tile; the wrapper raises vmem_limit_bytes to match.
        # TODO(synk): also tile the H*C lane dim when even an 8-row block
        # overflows VMEM (only relevant for H*C in the multi-million range).
        fitting = [cands[0]]
    best = None
    for tw in fitting:
        n = B * _cdiv(W, tw)
        score = (n >= min_total_blocks, n % 2 == 0, W % tw == 0, tw)
        if best is None or score > best[0]:
            best = (score, tw)
    return best[1]


def grid_position_embeddings(x, num_pos_feats=32):
    """x: (B, C_in, H, W) NCHW. Returns (B, W, H, 2*num_pos_feats) float32."""
    B, _, H, W = x.shape
    C = 2 * num_pos_feats
    HC = H * C
    # Lane-density note: HC % 128 == 0 (e.g. 16*64 = 1024) gives unmasked
    # full-lane stores -- the single biggest lever.  Other HC values still
    # compile and run correctly (block last dim == full dim), just with masked
    # tail stores.

    target_block, scoped_ceiling = _vmem_budgets()
    tile_w = _choose_tile_w(B, W, HC, target_block)
    n_w = _cdiv(W, tile_w)

    block_bytes = tile_w * HC * 4
    # Double-buffered output block + double-buffered constant rows + headroom.
    vmem_needed = 2 * block_bytes + 4 * HC * 4 + (1 << 20)
    vmem_limit = int(min(max(vmem_needed, 16 << 20), max(scoped_ceiling, vmem_needed)))

    # Host-side precomputed rows over the flattened (h, c) lane dim (C is even,
    # so channel parity survives the flattening):
    #   xgate[h*C + c] = 1.0 if c even else 0.0
    #   ybase[h*C + c] = 0.0 if c even else linspace(-1, 1, H)[h]
    h_lin = np.linspace(-1.0, 1.0, H, dtype=np.float32)
    c_even = (np.arange(C) % 2) == 0
    xgate = np.broadcast_to(c_even.astype(np.float32), (H, C)).reshape(1, 1, HC)
    ybase = np.where(c_even[None, :], np.float32(0.0),
                     h_lin[:, None]).astype(np.float32).reshape(1, 1, HC)
    xgate = jnp.asarray(xgate)
    ybase = jnp.asarray(ybase)

    kernel = functools.partial(_grid_pe_kernel, tile_w=tile_w, W=W)

    out_flat = pl.pallas_call(
        kernel,
        out_shape=jax.ShapeDtypeStruct((B, W, HC), jnp.float32),
        grid_spec=pltpu.PrefetchScalarGridSpec(
            num_scalar_prefetch=0,
            grid=(B, n_w),
            in_specs=[
                pl.BlockSpec((1, 1, HC), lambda b, w: (0, 0, 0)),
                pl.BlockSpec((1, 1, HC), lambda b, w: (0, 0, 0)),
            ],
            # Lane-dense last dim (full H*C); tile_w is a multiple of 8 or
            # equals W, so the (8, 128) block rule is satisfied.
            out_specs=pl.BlockSpec((1, tile_w, HC), lambda b, w: (b, w, 0)),
        ),
        compiler_params=pltpu.CompilerParams(
            dimension_semantics=("parallel", "parallel"),
            vmem_limit_bytes=vmem_limit,
        ),
        cost_estimate=pl.CostEstimate(
            flops=0,
            transcendentals=0,
            bytes_accessed=B * W * HC * 4 + 2 * HC * 4,
        ),
    )(xgate, ybase)
    # Free contiguous reshape back to the PyTorch output layout.
    return out_flat.reshape(B, W, H, C)


def _reference(x, num_pos_feats=32):
    # Pure-JAX reference mirroring the PyTorch forward.
    B, _, H, W = x.shape
    y_embed = jnp.linspace(-1.0, 1.0, H, dtype=jnp.float32).reshape(1, 1, H, 1)
    x_embed = jnp.linspace(-1.0, 1.0, W, dtype=jnp.float32).reshape(1, 1, 1, W)
    y_embed = jnp.broadcast_to(y_embed, (B, 1, H, W))
    x_embed = jnp.broadcast_to(x_embed, (B, 1, H, W))
    pos = jnp.concatenate([x_embed, y_embed], axis=1)          # (B, 2, H, W)
    pos = jnp.tile(pos, (1, num_pos_feats, 1, 1))              # (B, 2*N, H, W)
    pos = jnp.transpose(pos, (0, 3, 2, 1))                     # (B, W, H, 2*N)
    return pos


if __name__ == "__main__":
    key = jax.random.PRNGKey(0)
    B, Cin, H, W = 2, 4, 16, 16
    num_pos_feats = 32

    # Input only contributes its shape; values are irrelevant (as in PyTorch).
    x = jax.random.normal(key, (B, Cin, H, W), dtype=jnp.float32)

    out = grid_position_embeddings(x, num_pos_feats=num_pos_feats)
    out = jax.block_until_ready(out)

    ref = _reference(x, num_pos_feats=num_pos_feats)
    assert out.shape == (B, W, H, 2 * num_pos_feats), out.shape
    assert out.dtype == jnp.float32
    assert jnp.allclose(out, ref, atol=1e-5), "mismatch vs reference"

    print("KERNEL_OK")
</pallas_src>

<mosaic_0001>
module attributes {stable_mosaic.version = 11 : i64} {
  func.func @_grid_pe_kernel(%arg0: i32, %arg1: i32, %arg2: memref<1x1x1024xf32, #tpu.memory_space<vmem>>, %arg3: memref<1x1x1024xf32, #tpu.memory_space<vmem>>, %arg4: memref<1x8x1024xf32, #tpu.memory_space<vmem>>) attributes {dimension_semantics = [#tpu.dimension_semantics<parallel>, #tpu.dimension_semantics<parallel>], iteration_bounds = array<i64: 2, 2>, scalar_prefetch = 0 : i64, scratch_operands = 0 : i64, tpu.core_type = #tpu.core_type<tc>, window_params = [{pipeline_mode = #tpu.pipeline_mode<synchronous>, transform_indices = @transform_0, window_bounds = array<i64: 1, 1, 1024>}, {pipeline_mode = #tpu.pipeline_mode<synchronous>, transform_indices = @transform_1, window_bounds = array<i64: 1, 1, 1024>}, {transform_indices = @transform_2, window_bounds = array<i64: 1, 8, 1024>}]} {
    %c8_i32 = arith.constant 8 : i32
    %0 = arith.muli %arg1, %c8_i32 : i32
    %1 = tpu.iota {dimensions = array<i32: 1>} : vector<1x8x1xi32>
    %2 = vector.broadcast %0 : i32 to vector<1x8x1xi32>
    %3 = arith.addi %1, %2 : vector<1x8x1xi32>
    %4 = arith.sitofp %3 : vector<1x8x1xi32> to vector<1x8x1xf32>
    %cst = arith.constant 0.13333334 : f32
    %5 = vector.broadcast %cst : f32 to vector<1x8x1xf32>
    %6 = arith.mulf %4, %5 : vector<1x8x1xf32>
    %cst_0 = arith.constant 1.000000e+00 : f32
    %7 = vector.broadcast %cst_0 : f32 to vector<1x8x1xf32>
    %8 = arith.subf %6, %7 : vector<1x8x1xf32>
    %c0 = arith.constant 0 : index
    %c0_1 = arith.constant 0 : index
    %c0_2 = arith.constant 0 : index
    %9 = vector.load %arg2[%c0, %c0_1, %c0_2] : memref<1x1x1024xf32, #tpu.memory_space<vmem>>, vector<1x1x1024xf32>
    %10 = vector.broadcast %8 : vector<1x8x1xf32> to vector<1x8x1024xf32>
    %11 = vector.broadcast %9 : vector<1x1x1024xf32> to vector<1x8x1024xf32>
    %12 = arith.mulf %10, %11 : vector<1x8x1024xf32>
    %c0_3 = arith.constant 0 : index
    %c0_4 = arith.constant 0 : index
    %c0_5 = arith.constant 0 : index
    %13 = vector.load %arg3[%c0_3, %c0_4, %c0_5] : memref<1x1x1024xf32, #tpu.memory_space<vmem>>, vector<1x1x1024xf32>
    %14 = vector.broadcast %13 : vector<1x1x1024xf32> to vector<1x8x1024xf32>
    %15 = arith.addf %12, %14 : vector<1x8x1024xf32>
    %c0_6 = arith.constant 0 : index
    %c0_7 = arith.constant 0 : index
    %c0_8 = arith.constant 0 : index
    %16 = vector.load %arg4[%c0_6, %c0_7, %c0_8] : memref<1x8x1024xf32, #tpu.memory_space<vmem>>, vector<1x8x1024xf32>
    tpu.vector_store %arg4[%c0_6, %c0_7, %c0_8], %15 {strides = array<i32>} : memref<1x8x1024xf32, #tpu.memory_space<vmem>>, vector<1x8x1024xf32>,
    return
  }
  func.func @transform_0(%arg0: i32, %arg1: i32) -> (i32, i32, i32) {
    %c0_i32 = arith.constant 0 : i32
    %c0_i32_0 = arith.constant 0 : i32
    %c0_i32_1 = arith.constant 0 : i32
    %c0_i32_2 = arith.constant 0 : i32
    return %c0_i32, %c0_i32_0, %c0_i32_1 : i32, i32, i32
  }
  func.func @transform_1(%arg0: i32, %arg1: i32) -> (i32, i32, i32) {
    %c0_i32 = arith.constant 0 : i32
    %c0_i32_0 = arith.constant 0 : i32
    %c0_i32_1 = arith.constant 0 : i32
    %c0_i32_2 = arith.constant 0 : i32
    return %c0_i32, %c0_i32_0, %c0_i32_1 : i32, i32, i32
  }
  func.func @transform_2(%arg0: i32, %arg1: i32) -> (i32, i32, i32) {
    %c0_i32 = arith.constant 0 : i32
    %c0_i32_0 = arith.constant 0 : i32
    return %arg0, %arg1, %c0_i32 : i32, i32, i32
  }
}

</mosaic_0001>

<llo_original>
// kernel: tpu_custom_call.1
$region0: #{tpu_custom_call.1}
  #allocation0 [shape = 'u32[]', space=smem, size = 0x4, offset = 0x4, fixed_abs, tag = 'smem constant byte address 0x4 - core index']
  #allocation1 [shape = 'u32[144,128]{1,0:T(1,128)}', space=vmem, size = 0x12000, scoped, tag = 'internal scratch']
  %s0 = inlined_call_operand.hbm [shape: f32[1,1,1024], index: 0, kind: input, shape index: {}]
  %s1 = inlined_call_operand.hbm [shape: f32[1,1,1024], index: 1, kind: input, shape index: {}]
  %s2 = inlined_call_operand.hbm [shape: f32[2,16,1024], index: 2, kind: output, shape index: {}]
  %s3 = sld [smem:[#allocation0]]
  $region49: #{tpu_custom_call.1} parent=0
    _
  %s5 = ssub.s32 1, %s3
  %s6 = scalar_select 0, %s5, %s3
  $region1: #{tpu_custom_call.1} parent=0
    #allocation2 [shape = 'u8[4096]{0}', space=vmem, size = 0x1000, scoped, tag = 'input window, operand 0, single buffered']
    #allocation3 [shape = 's32[2]{0}', space=sflag, size = 0x8, scoped, tag = 'scoped memory for tpu_custom_call.1']
    #allocation4 [shape = 's32[2]{0}', space=sflag, size = 0x8, scoped, tag = 'scoped memory for tpu_custom_call.1']
    #allocation5 [shape = 'u8[4096]{0}', space=vmem, size = 0x1000, scoped, tag = 'input window, operand 1, single buffered']
    #allocation6 [shape = 's32[1]{0}', space=sflag, size = 0x4, scoped, tag = 'scoped memory for tpu_custom_call.1']
    #allocation7 [shape = 'u8[65536]{0}', space=vmem, size = 0x10000, scoped, tag = 'output window, operand 0']
    %7 = vsyncpa [#allocation3], 0
    %8 = vsyncpa [#allocation6], 0
    %9 = vsyncpa [#allocation4], 0
    %s10 = scalar_lea.sflag [#allocation4], 1
    %11 = vsyncpa %s10, 0
    loop: start=0, step=1, limit=6
    $region2: #{tpu_custom_call.1} parent=1 // loop_pre_header
      _
    $region3: #{tpu_custom_call.1} parent=1 // loop_header
      %s13 = sphi 0, %s17
      %p14 = scmp.ge.s32.totalorder %s13, 6
      %s20 = sphi 0, %s32
      %s21 = sphi 0, %s28
      %s22 = sphi 0, %s20
      %s23 = sphi 0, %s21
      %s24 = sphi 0, %s22
      %s25 = sphi 0, %s23
      %s33 = sphi 0, %s33
      %s35 = sphi 0, %s33
      %s36 = sphi 0, %s35
      %s50 = sphi 0, %s36
      %s54 = sphi 0, %s54
      %s56 = sphi 0, %s54
      %s57 = sphi 0, %s56
      %s71 = sphi 0, %s57
      %s79 = sphi 0, %s81
      %s82 = sphi 0, %s79
      %s83 = sphi 0, %s82
      %s99 = sphi 0, %s83
    $region4: #{tpu_custom_call.1} parent=1 // loop_header_branch
      %16 = sbr.rel (%p14) target = $region8
    $region5: #{tpu_custom_call.1} parent=1 // loop_body
      %s18 = ssub.s32 %s13, 1
      %s19 = ssub.s32 %s13, 2
      %s26 = sadd.s32 1, %s21
      %p27 = scmp.ge.s32.totalorder %s26, 2
      %s28 = scalar_select %p27, 0, %s26
      %s29 = sadd.s32 1, %s20
      %s30 = scalar_select %p27, %s29, %s20
      %p31 = scmp.ge.s32.totalorder %s30, 2
      %s32 = scalar_select %p31, 0, %s30
      %s34 = sadd.s32 %s33, 1
      %p37 = scmp.eq.s32.totalorder %s13, 3
      %p38 = scmp.ne.s32.totalorder %s33, %s35
      %p39 = scmp.eq.s32.totalorder %s13, 0
      %p40 = por %p38, %p39
      %p41 = scmp.ne.s32.totalorder %s33, %s35
      %p42 = scmp.eq.s32.totalorder %s18, 3
      %p43 = por %p41, %p42
      %p44 = scmp.ne.s32.totalorder %s35, %s36
      %p45 = scmp.eq.s32.totalorder %s18, 0
      %p46 = por %p44, %p45
      %p47 = scmp.ne.s32.totalorder %s35, %s36
      %p48 = scmp.eq.s32.totalorder %s19, 3
      %p49 = por %p47, %p48
      %p51 = scmp.ne.s32.totalorder %s36, %s50
      %p52 = scmp.eq.s32.totalorder %s19, 0
      %p53 = por %p51, %p52
      %s55 = sadd.s32 %s54, 1
      %p58 = scmp.eq.s32.totalorder %s13, 3
      %p59 = scmp.ne.s32.totalorder %s54, %s56
      %p60 = scmp.eq.s32.totalorder %s13, 0
      %p61 = por %p59, %p60
      %p62 = scmp.ne.s32.totalorder %s54, %s56
      %p63 = scmp.eq.s32.totalorder %s18, 3
      %p64 = por %p62, %p63
      %p65 = scmp.ne.s32.totalorder %s56, %s57
      %p66 = scmp.eq.s32.totalorder %s18, 0
      %p67 = por %p65, %p66
      %p68 = scmp.ne.s32.totalorder %s56, %s57
      %p69 = scmp.eq.s32.totalorder %s19, 3
      %p70 = por %p68, %p69
      %p72 = scmp.ne.s32.totalorder %s57, %s71
      %p73 = scmp.eq.s32.totalorder %s19, 0
      %p74 = por %p72, %p73
      %s75 = ssub.s32 %s20, %s32
      %s76 = ssub.s32 %s21, %s28
      %s77 = sor.u32 %s75, %s76
      %p78 = scmp.eq.s32.totalorder %s77, 0
      %s80 = sadd.s32 %s79, 1
      %s81 = scalar_select %p78, %s79, %s80
      %p84 = pneg %p78
      %p85 = scmp.eq.s32.totalorder %s13, 3
      %p86 = por %p84, %p85
      %p87 = scmp.ne.s32.totalorder %s79, %s82
      %p88 = scmp.eq.s32.totalorder %s13, 0
      %p89 = por %p87, %p88
      %p90 = scmp.ne.s32.totalorder %s79, %s82
      %p91 = scmp.eq.s32.totalorder %s18, 3
      %p92 = por %p90, %p91
      %p93 = scmp.ne.s32.totalorder %s82, %s83
      %p94 = scmp.eq.s32.totalorder %s18, 0
      %p95 = por %p93, %p94
      %p96 = scmp.ne.s32.totalorder %s82, %s83
      %p97 = scmp.eq.s32.totalorder %s19, 3
      %p98 = por %p96, %p97
      %p100 = scmp.ne.s32.totalorder %s83, %s99
      %p101 = scmp.eq.s32.totalorder %s19, 0
      %p102 = por %p100, %p101
      %p103 = scmp.le.s32.totalorder 1, %s13
      %p104 = scmp.lt.s32.totalorder %s13, 5
      %p105 = pnand %p103, %p104
      %p106 = pneg %p105
      // Predicated region
      $region9: #{tpu_custom_call.1} parent=5 // pred_check
        _
      $region10: #{tpu_custom_call.1} parent=5 // pred_check_branch
        %108 = sbr.rel (%p105) target = $region12
      $region11: #{tpu_custom_call.1} parent=5 // pred_region
        %s109 = ssub.s32 %s13, 1
        // Predicated region
        $region13: #{tpu_custom_call.1} parent=11 // pred_check
          %p110 = pneg %p46
        $region14: #{tpu_custom_call.1} parent=11 // pred_check_branch
          %112 = sbr.rel (%p110) target = $region16
        $region15: #{tpu_custom_call.1} parent=11 // pred_region
          %s114 = ssub.s32 128, 128
          %115 = vsyncadd [#allocation3], %s114
          %s117 = sshll.u32 [#allocation2], 4
          %s118 = int_to_ptr.vmem [resolvable:$true] %s117
          %120 = dma.hbm_to_vmem [thread:$0]  %s0, 128, %s118, [#allocation3]
        $region16: #{tpu_custom_call.1} parent=11 // pred_fallthru
          _
        // Predicated region
        $region17: #{tpu_custom_call.1} parent=11 // pred_check
          %p121 = pneg %p67
        $region18: #{tpu_custom_call.1} parent=11 // pred_check_branch
          %123 = sbr.rel (%p121) target = $region20
        $region19: #{tpu_custom_call.1} parent=11 // pred_region
          %s125 = ssub.s32 128, 128
          %126 = vsyncadd [#allocation6], %s125
          %s128 = sshll.u32 [#allocation5], 4
          %s129 = int_to_ptr.vmem [resolvable:$true] %s128
          %131 = dma.hbm_to_vmem [thread:$0]  %s1, 128, %s129, [#allocation6]
        $region20: #{tpu_custom_call.1} parent=11 // pred_fallthru
          _
      $region12: #{tpu_custom_call.1} parent=5 // pred_fallthru
        _
      %p132 = scmp.lt.s32.totalorder %s13, 4
      // Predicated region
      $region21: #{tpu_custom_call.1} parent=5 // pred_check
        %p133 = pneg %p132
      $region22: #{tpu_custom_call.1} parent=5 // pred_check_branch
        %135 = sbr.rel (%p133) target = $region24
      $region23: #{tpu_custom_call.1} parent=5 // pred_region
        _
      $region24: #{tpu_custom_call.1} parent=5 // pred_fallthru
        _
      %p136 = scmp.le.s32.totalorder 1, %s13
      %p137 = scmp.lt.s32.totalorder %s13, 5
      %p138 = pnand %p136, %p137
      %p139 = pneg %p138
      // Predicated region
      $region25: #{tpu_custom_call.1} parent=5 // pred_check
        _
      $region26: #{tpu_custom_call.1} parent=5 // pred_check_branch
        %141 = sbr.rel (%p138) target = $region28
      $region27: #{tpu_custom_call.1} parent=5 // pred_region
        %s142 = ssub.s32 %s13, 1
        // Predicated region
        $region29: #{tpu_custom_call.1} parent=27 // pred_check
          %p143 = pneg %p46
        $region30: #{tpu_custom_call.1} parent=27 // pred_check_branch
          %145 = sbr.rel (%p143) target = $region32
        $region31: #{tpu_custom_call.1} parent=27 // pred_region
          %146 = dma.done [#allocation3], 128
        $region32: #{tpu_custom_call.1} parent=27 // pred_fallthru
          _
        // Predicated region
        $region33: #{tpu_custom_call.1} parent=27 // pred_check
          %p147 = pneg %p67
        $region34: #{tpu_custom_call.1} parent=27 // pred_check_branch
          %149 = sbr.rel (%p147) target = $region36
        $region35: #{tpu_custom_call.1} parent=27 // pred_region
          %150 = dma.done [#allocation6], 128
        $region36: #{tpu_custom_call.1} parent=27 // pred_fallthru
          _
        %p151 = pneg %p46
        %p152 = pneg %p43
        %p153 = pneg %p67
        %p154 = pneg %p64
        %p155 = pneg %p95
        %p156 = pneg %p92
        %s157 = sand.u32 %s82, 1
        %s158 = scalar_lea.sflag [#allocation4], %s157
        %s159 = sand.u32 %s82, 1
        %s160 = smul.addr %s159, 64
        %s161 = scalar_lea.vmem [#allocation7], %s160
        %s162 = smul.u32 %s23, 8
        %v163 = vlaneseq
        %v164 = vshrl.u32 %v163, 7
        %v165 = vstv %s162
        %v166 = vadd.s32 %v164, %v165
        %v167 = vcvt.s32.f32 %v166
        %v168 = vmul.f32 %v167, 0.13333334
        %v169 = vsub.f32 %v168, 1.0
        %v170 = vld [vmem:[#allocation2] sm:$0xff]
        %v172 = vlaneseq
        %v173 = vshrl.u32 %v172, 7
        %v174 = vsub.s32 0, %v173
        %v175 = vrot.slane %v170, %v174
        %v176 = vlaneseq
        %v177 = vshrl.u32 %v176, 7
        %v178 = vsub.s32 1, %v177
        %v179 = vrot.slane %v170, %v178
        %v180 = vlaneseq
        %v181 = vshrl.u32 %v180, 7
        %v182 = vsub.s32 2, %v181
        %v183 = vrot.slane %v170, %v182
        %v184 = vlaneseq
        %v185 = vshrl.u32 %v184, 7
        %v186 = vsub.s32 3, %v185
        %v187 = vrot.slane %v170, %v186
        %v188 = vlaneseq
        %v189 = vshrl.u32 %v188, 7
        %v190 = vsub.s32 4, %v189
        %v191 = vrot.slane %v170, %v190
        %v192 = vlaneseq
        %v193 = vshrl.u32 %v192, 7
        %v194 = vsub.s32 5, %v193
        %v195 = vrot.slane %v170, %v194
        %v196 = vlaneseq
        %v197 = vshrl.u32 %v196, 7
        %v198 = vsub.s32 6, %v197
        %v199 = vrot.slane %v170, %v198
        %v200 = vlaneseq
        %v201 = vshrl.u32 %v200, 7
        %v202 = vsub.s32 7, %v201
        %v203 = vrot.slane %v170, %v202
        %v212 = vmul.f32 %v169, %v175
        %v213 = vmul.f32 %v169, %v179
        %v214 = vmul.f32 %v169, %v183
        %v215 = vmul.f32 %v169, %v187
        %v216 = vmul.f32 %v169, %v191
        %v217 = vmul.f32 %v169, %v195
        %v218 = vmul.f32 %v169, %v199
        %v219 = vmul.f32 %v169, %v203
        %v220 = vld [vmem:[#allocation5] sm:$0xff]
        %v222 = vlaneseq
        %v223 = vshrl.u32 %v222, 7
        %v224 = vsub.s32 0, %v223
        %v225 = vrot.slane %v220, %v224
        %v226 = vlaneseq
        %v227 = vshrl.u32 %v226, 7
        %v228 = vsub.s32 1, %v227
        %v229 = vrot.slane %v220, %v228
        %v230 = vlaneseq
        %v231 = vshrl.u32 %v230, 7
        %v232 = vsub.s32 2, %v231
        %v233 = vrot.slane %v220, %v232
        %v234 = vlaneseq
        %v235 = vshrl.u32 %v234, 7
        %v236 = vsub.s32 3, %v235
        %v237 = vrot.slane %v220, %v236
        %v238 = vlaneseq
        %v239 = vshrl.u32 %v238, 7
        %v240 = vsub.s32 4, %v239
        %v241 = vrot.slane %v220, %v240
        %v242 = vlaneseq
        %v243 = vshrl.u32 %v242, 7
        %v244 = vsub.s32 5, %v243
        %v245 = vrot.slane %v220, %v244
        %v246 = vlaneseq
        %v247 = vshrl.u32 %v246, 7
        %v248 = vsub.s32 6, %v247
        %v249 = vrot.slane %v220, %v248
        %v250 = vlaneseq
        %v251 = vshrl.u32 %v250, 7
        %v252 = vsub.s32 7, %v251
        %v253 = vrot.slane %v220, %v252
        %v262 = vadd.f32 %v212, %v225
        %v263 = vadd.f32 %v213, %v229
        %v264 = vadd.f32 %v214, %v233
        %v265 = vadd.f32 %v215, %v237
        %v266 = vadd.f32 %v216, %v241
        %v267 = vadd.f32 %v217, %v245
        %v268 = vadd.f32 %v218, %v249
        %v269 = vadd.f32 %v219, %v253
        %270 = vst [vmem:[%s161] sm:$0xff] %v262
        %271 = vst [vmem:[%s161 + $0x8] sm:$0xff] %v263
        %272 = vst [vmem:[%s161 + $0x10] sm:$0xff] %v264
        %273 = vst [vmem:[%s161 + $0x18] sm:$0xff] %v265
        %274 = vst [vmem:[%s161 + $0x20] sm:$0xff] %v266
        %275 = vst [vmem:[%s161 + $0x28] sm:$0xff] %v267
        %276 = vst [vmem:[%s161 + $0x30] sm:$0xff] %v268
        %277 = vst [vmem:[%s161 + $0x38] sm:$0xff] %v269
        %s278 = sand.u32 %s82, 1
        %s279 = scalar_lea.sflag [#allocation4], %s278
        %s280 = sand.u32 %s82, 1
        %s281 = smul.addr %s280, 64
        %s282 = scalar_lea.vmem [#allocation7], %s281
        // Predicated region
        $region37: #{tpu_custom_call.1} parent=27 // pred_check
          %p283 = pneg %p92
        $region38: #{tpu_custom_call.1} parent=27 // pred_check_branch
          %285 = sbr.rel (%p283) target = $region40
        $region39: #{tpu_custom_call.1} parent=27 // pred_region
          %s287 = ssub.s32 1024, 1024
          %288 = vsyncadd %s279, %s287
          %s289 = smul.addr %s23, 8
          %s290 = smul.addr %s22, 16
          %s291 = sadd.s32 %s289, %s290
          %s292 = smul.addr %s291, 128
          %s293 = scalar_lea.hbm %s2, %s292
          %s295 = sshll.u32 %s282, 4
          %s296 = int_to_ptr.vmem [resolvable:$true] %s295
          %298 = dma.vmem_to_hbm [thread:$0]  %s296, 1024, %s293, %s279
        $region40: #{tpu_custom_call.1} parent=27 // pred_fallthru
          _
      $region28: #{tpu_custom_call.1} parent=5 // pred_fallthru
        _
      %p299 = scmp.le.s32.totalorder 2, %s13
      // Predicated region
      $region41: #{tpu_custom_call.1} parent=5 // pred_check
        %p300 = pneg %p299
      $region42: #{tpu_custom_call.1} parent=5 // pred_check_branch
        %302 = sbr.rel (%p300) target = $region44
      $region43: #{tpu_custom_call.1} parent=5 // pred_region
        %s303 = ssub.s32 %s13, 2
        // Predicated region
        $region45: #{tpu_custom_call.1} parent=43 // pred_check
          %p304 = pneg %p98
        $region46: #{tpu_custom_call.1} parent=43 // pred_check_branch
          %306 = sbr.rel (%p304) target = $region48
        $region47: #{tpu_custom_call.1} parent=43 // pred_region
          %s307 = sand.u32 %s83, 1
          %s308 = scalar_lea.sflag [#allocation4], %s307
          %s309 = sand.u32 %s83, 1
          %s310 = smul.addr %s309, 64
          %s311 = scalar_lea.vmem [#allocation7], %s310
          %312 = dma.done %s308, 1024
        $region48: #{tpu_custom_call.1} parent=43 // pred_fallthru
          _
      $region44: #{tpu_custom_call.1} parent=5 // pred_fallthru
        _
    $region6: #{tpu_custom_call.1} parent=1 // loop_footer
      %s17 = sadd.s32 1, %s13
    $region7: #{tpu_custom_call.1} parent=1 // loop_footer_branch
      %12 = sbr.rel target = $region3
    $region8: #{tpu_custom_call.1} parent=1 // loop_exit
      _
    %313 = vsyncpa [#allocation3], 1
    %s314 = scalar_lea.sflag [#allocation3], 1
    %315 = vsyncpa %s314, 1
    %316 = vsyncpa [#allocation6], 1
    %317 = vsyncpa [#allocation4], 1
    %s318 = scalar_lea.sflag [#allocation4], 1
    %319 = vsyncpa %s318, 1

</llo_original>
